<compile_context>
chip_gen: v7x
topology: tpu7x:2x2x1
jax: 0.10.0
libtpu: 0.0.40
codegen_flags: <defaults>
</compile_context>

<pallas_src>
import functools

import jax
import jax.numpy as jnp
from jax.experimental import pallas as pl
from jax.experimental.pallas import tpu as pltpu


def _round_up(x, m):
    return ((x + m - 1) // m) * m


# ----------------------------- Pallas kernels ------------------------------

def _gcn_agg_kernel_resident(adj_ref, hs_ref, norm_ref, out_ref, *, tm, tk):
    """out[i] = norm_i ⊙ (Σ_k adj[i,k] @ hs[k] + hs[i]); hs fully VMEM-resident."""
    i = pl.program_id(0)
    k = pl.program_id(1)

    @pl.when(k == 0)
    def _init():
        # Self-loop (identity) term: + hs_i.  Scaled by norm_i in finalize.
        row0 = pl.multiple_of(i * tm, 16)
        out_ref[...] = hs_ref[pl.ds(row0, tm), :].astype(jnp.float32)

    col0 = pl.multiple_of(k * tk, 128)
    out_ref[...] += jnp.dot(adj_ref[...], hs_ref[pl.ds(col0, tk), :],
                            preferred_element_type=jnp.float32)

    @pl.when(k == pl.num_programs(1) - 1)
    def _finalize():
        out_ref[...] *= norm_ref[...]


def _gcn_agg_kernel_stream(adj_ref, hsk_ref, hsi_ref, norm_ref, out_ref):
    """Streaming fallback: hs re-blocked along the reduction axis."""
    k = pl.program_id(1)

    @pl.when(k == 0)
    def _init():
        out_ref[...] = hsi_ref[...].astype(jnp.float32)

    out_ref[...] += jnp.dot(adj_ref[...], hsk_ref[...],
                            preferred_element_type=jnp.float32)

    @pl.when(k == pl.num_programs(1) - 1)
    def _finalize():
        out_ref[...] *= norm_ref[...]


# ------------------------------- Wrapper ------------------------------------

def gcn_layer(adj, x, w, b, *, agg_dtype=jnp.bfloat16, tm_max=512, tk_max=1024,
              hs_resident=None):
    """GCNLayer forward.

    adj: (N, N); x: (N, in_dim); w: (out_dim, in_dim) (PyTorch layout); b: (out_dim,).
    Returns (N, out_dim) float32.
    """
    n = x.shape[0]
    out_dim = w.shape[0]

    # ---- Pre-stage in plain XLA (tiny matmul + one reduction over adj). ----
    h = jnp.dot(x.astype(jnp.float32), w.astype(jnp.float32).T,
                preferred_element_type=jnp.float32) + b.astype(jnp.float32)[None, :]
    deg = jnp.sum(adj.astype(jnp.float32), axis=1) + 1.0      # identity folded in
    norm = jax.lax.rsqrt(deg)[:, None]                         # (N, 1) f32
    h_scaled = norm * h                                        # hs = norm ⊙ h

    # ---- Tile selection: big tiles for HBM efficiency, >=2 row tiles. ----
    tm = max(16, min(tm_max, _round_up(-(-n // 2), 16)))       # multiple of 16
    tk = min(tk_max, _round_up(n, 128))                        # multiple of 128
    n_rows = _round_up(n, tm)
    n_cols = _round_up(n, tk)
    n_hs = max(n_rows, n_cols)
    f_pad = _round_up(max(out_dim, 128), 128)                  # lane-dense output
    itemsize = jnp.dtype(agg_dtype).itemsize

    # ---- Pad only when needed (padding contributes exact zeros). ----
    adj_c = adj.astype(agg_dtype)
    if (n_rows, n_cols) != (n, n):
        adj_p = jnp.zeros((n_rows, n_cols), agg_dtype).at[:n, :n].set(adj_c)
    else:
        adj_p = adj_c
    hs_p = jnp.zeros((n_hs, f_pad), agg_dtype).at[:n, :out_dim].set(
        h_scaled.astype(agg_dtype))
    if n_rows != n:
        norm_p = jnp.zeros((n_rows, 1), jnp.float32).at[:n, :].set(norm)
    else:
        norm_p = norm

    # ---- Generation-aware VMEM budget (v7x has only 64 MiB physical). ----
    try:
        vmem_cap = int(pltpu.get_tpu_info().vmem_capacity_bytes)
    except Exception:
        vmem_cap = 64 * 1024 * 1024
    vmem_limit = int(0.75 * vmem_cap)

    # Double-buffered tile footprint (adj + out + norm blocks).
    fixed_bytes = 2 * tm * tk * itemsize + 2 * tm * f_pad * 4 + 2 * tm * 4
    hs_res_bytes = 2 * n_hs * f_pad * itemsize                 # resident, double-buffered
    if hs_resident is None:
        hs_resident = (fixed_bytes + hs_res_bytes) <= int(0.6 * vmem_limit)

    grid = (n_rows // tm, n_cols // tk)                        # reduction axis last

    if hs_resident:
        kernel = functools.partial(_gcn_agg_kernel_resident, tm=tm, tk=tk)
        in_specs = [
            pl.BlockSpec((tm, tk), lambda i, k: (i, k)),       # adj tile
            pl.BlockSpec((n_hs, f_pad), lambda i, k: (0, 0)),  # hs, VMEM-resident
            pl.BlockSpec((tm, 1), lambda i, k: (i, 0)),        # norm rows
        ]
        operands = (adj_p, hs_p, norm_p)
        hs_read_bytes = n_hs * f_pad * itemsize
    else:
        kernel = _gcn_agg_kernel_stream
        in_specs = [
            pl.BlockSpec((tm, tk), lambda i, k: (i, k)),       # adj tile
            pl.BlockSpec((tk, f_pad), lambda i, k: (k, 0)),    # hs, reduction-blocked
            pl.BlockSpec((tm, f_pad), lambda i, k: (i, 0)),    # hs, row-blocked (self)
            pl.BlockSpec((tm, 1), lambda i, k: (i, 0)),        # norm rows
        ]
        operands = (adj_p, hs_p, hs_p, norm_p)
        hs_read_bytes = ((n_rows // tm) * n_cols * f_pad * itemsize
                         + n_rows * f_pad * itemsize)

    out = pl.pallas_call(
        kernel,
        out_shape=jax.ShapeDtypeStruct((n_rows, f_pad), jnp.float32),
        grid=grid,
        in_specs=in_specs,
        out_specs=pl.BlockSpec((tm, f_pad), lambda i, k: (i, 0)),
        compiler_params=pltpu.CompilerParams(
            dimension_semantics=("parallel", "arbitrary"),
            vmem_limit_bytes=vmem_limit,
        ),
        cost_estimate=pl.CostEstimate(
            flops=2 * n_rows * n_cols * f_pad,
            transcendentals=0,
            bytes_accessed=(n_rows * n_cols * itemsize   # adj
                            + hs_read_bytes              # hs (resident or streamed)
                            + n_rows * 4                 # norm
                            + n_rows * f_pad * 4),       # out
        ),
    )(*operands)

    return out[:n, :out_dim]


def gcn_ref(adj, x, w, b):
    """Pure-JAX reference mirroring the PyTorch forward exactly."""
    n = adj.shape[0]
    adj_hat = adj + jnp.eye(n, dtype=adj.dtype)
    h = x @ w.T + b
    norm = jnp.sum(adj_hat, axis=1) ** (-0.5)
    return (norm[None, :] * adj_hat * norm[:, None]) @ h


if __name__ == "__main__":
    key = jax.random.PRNGKey(0)
    k_adj, k_x, k_w, k_b = jax.random.split(key, 4)

    # Small but tiling-exercising shapes: 256 nodes, 16 -> 32 features.
    # tm=128, tk=256 -> grid (2, 1), out_dim lane-padded to 128, no adj padding.
    N, IN_DIM, OUT_DIM = 256, 16, 32

    # Symmetric non-negative adjacency so degrees are strictly positive.
    raw = jax.random.uniform(k_adj, (N, N), dtype=jnp.float32)
    adj = (raw + raw.T) * 0.5
    x = jax.random.normal(k_x, (N, IN_DIM), dtype=jnp.float32)

    # Deterministic nn.Linear-style init (uniform in +/- 1/sqrt(in_dim)).
    bound = 1.0 / (IN_DIM ** 0.5)
    w = jax.random.uniform(k_w, (OUT_DIM, IN_DIM), minval=-bound, maxval=bound,
                           dtype=jnp.float32)
    b = jax.random.uniform(k_b, (OUT_DIM,), minval=-bound, maxval=bound,
                           dtype=jnp.float32)

    ref = gcn_ref(adj, x, w, b)

    # 1) Bit-tight path: f32 aggregation, VMEM-resident hs.
    out_f32 = jax.block_until_ready(gcn_layer(adj, x, w, b, agg_dtype=jnp.float32))
    assert out_f32.shape == (N, OUT_DIM)
    assert bool(jnp.allclose(out_f32, ref, atol=1e-4, rtol=1e-4)), \
        float(jnp.max(jnp.abs(out_f32 - ref)))

    # 2) Streaming (non-resident hs) fallback path, f32.
    out_stream = jax.block_until_ready(
        gcn_layer(adj, x, w, b, agg_dtype=jnp.float32, hs_resident=False))
    assert bool(jnp.allclose(out_stream, ref, atol=1e-4, rtol=1e-4)), \
        float(jnp.max(jnp.abs(out_stream - ref)))

    # 3) Default fast path: bf16 adj / hs into the MXU, f32 accumulation.
    out_bf16 = jax.block_until_ready(gcn_layer(adj, x, w, b))
    assert bool(jnp.allclose(out_bf16, ref, atol=5e-3, rtol=5e-2)), \
        float(jnp.max(jnp.abs(out_bf16 - ref)))

    print("KERNEL_OK")
</pallas_src>

<mosaic_0001>
module attributes {stable_mosaic.version = 11 : i64} {
  func.func @_gcn_agg_kernel_resident(%arg0: i32, %arg1: i32, %arg2: memref<128x256xf32, #tpu.memory_space<vmem>>, %arg3: memref<256x128xf32, #tpu.memory_space<vmem>>, %arg4: memref<128x1xf32, #tpu.memory_space<vmem>>, %arg5: memref<128x128xf32, #tpu.memory_space<vmem>>) attributes {dimension_semantics = [#tpu.dimension_semantics<parallel>, #tpu.dimension_semantics<arbitrary>], iteration_bounds = array<i64: 2, 1>, scalar_prefetch = 0 : i64, scratch_operands = 0 : i64, tpu.core_type = #tpu.core_type<tc>, window_params = [{transform_indices = @transform_0, window_bounds = array<i64: 128, 256>}, {pipeline_mode = #tpu.pipeline_mode<synchronous>, transform_indices = @transform_1, window_bounds = array<i64: 256, 128>}, {transform_indices = @transform_2, window_bounds = array<i64: 128, 1>}, {transform_indices = @transform_3, window_bounds = array<i64: 128, 128>}]} {
    %c0_i32 = arith.constant 0 : i32
    %0 = arith.cmpi eq, %arg1, %c0_i32 : i32
    %1 = arith.extui %0 : i1 to i32
    %c0_i32_0 = arith.constant 0 : i32
    %2 = arith.cmpi ne, %1, %c0_i32_0 : i32
    scf.if %2 {
      %c128_i32 = arith.constant 128 : i32
      %15 = arith.muli %arg0, %c128_i32 : i32
      %16 = tpu.assume_multiple %15, 16 : i32
      %17 = arith.index_cast %16 : i32 to index
      %c0_9 = arith.constant 0 : index
      %18 = vector.load %arg3[%17, %c0_9] : memref<256x128xf32, #tpu.memory_space<vmem>>, vector<128x128xf32>
      %c0_10 = arith.constant 0 : index
      %c0_11 = arith.constant 0 : index
      %19 = vector.load %arg5[%c0_10, %c0_11] : memref<128x128xf32, #tpu.memory_space<vmem>>, vector<128x128xf32>
      tpu.vector_store %arg5[%c0_10, %c0_11], %18 {strides = array<i32>} : memref<128x128xf32, #tpu.memory_space<vmem>>, vector<128x128xf32>,
    } else {
    }
    %c256_i32 = arith.constant 256 : i32
    %3 = arith.muli %arg1, %c256_i32 : i32
    %4 = tpu.assume_multiple %3, 128 : i32
    %c0 = arith.constant 0 : index
    %c0_1 = arith.constant 0 : index
    %5 = vector.load %arg5[%c0, %c0_1] : memref<128x128xf32, #tpu.memory_space<vmem>>, vector<128x128xf32>
    %c0_2 = arith.constant 0 : index
    %c0_3 = arith.constant 0 : index
    %6 = vector.load %arg2[%c0_2, %c0_3] : memref<128x256xf32, #tpu.memory_space<vmem>>, vector<128x256xf32>
    %7 = arith.index_cast %4 : i32 to index
    %c0_4 = arith.constant 0 : index
    %8 = vector.load %arg3[%7, %c0_4] : memref<256x128xf32, #tpu.memory_space<vmem>>, vector<256x128xf32>
    %cst = arith.constant dense<0.000000e+00> : vector<128x128xf32>
    %9 = tpu.matmul %6, %8, %cst {dimension_numbers = #tpu.dot_dimension_numbers<[1], [0], [0], [1], [0, 0, 1, 1], [], []>} : vector<128x256xf32>, vector<256x128xf32>, vector<128x128xf32> -> vector<128x128xf32>
    %10 = arith.addf %5, %9 : vector<128x128xf32>
    %c0_5 = arith.constant 0 : index
    %c0_6 = arith.constant 0 : index
    %11 = vector.load %arg5[%c0_5, %c0_6] : memref<128x128xf32, #tpu.memory_space<vmem>>, vector<128x128xf32>
    tpu.vector_store %arg5[%c0_5, %c0_6], %10 {strides = array<i32>} : memref<128x128xf32, #tpu.memory_space<vmem>>, vector<128x128xf32>,
    %c0_i32_7 = arith.constant 0 : i32
    %12 = arith.cmpi eq, %arg1, %c0_i32_7 : i32
    %13 = arith.extui %12 : i1 to i32
    %c0_i32_8 = arith.constant 0 : i32
    %14 = arith.cmpi ne, %13, %c0_i32_8 : i32
    scf.if %14 {
      %c0_9 = arith.constant 0 : index
      %c0_10 = arith.constant 0 : index
      %15 = vector.load %arg5[%c0_9, %c0_10] : memref<128x128xf32, #tpu.memory_space<vmem>>, vector<128x128xf32>
      %c0_11 = arith.constant 0 : index
      %c0_12 = arith.constant 0 : index
      %16 = vector.load %arg4[%c0_11, %c0_12] : memref<128x1xf32, #tpu.memory_space<vmem>>, vector<128x1xf32>
      %17 = vector.broadcast %16 : vector<128x1xf32> to vector<128x128xf32>
      %18 = arith.mulf %15, %17 : vector<128x128xf32>
      %c0_13 = arith.constant 0 : index
      %c0_14 = arith.constant 0 : index
      %19 = vector.load %arg5[%c0_13, %c0_14] : memref<128x128xf32, #tpu.memory_space<vmem>>, vector<128x128xf32>
      tpu.vector_store %arg5[%c0_13, %c0_14], %18 {strides = array<i32>} : memref<128x128xf32, #tpu.memory_space<vmem>>, vector<128x128xf32>,
    } else {
    }
    return
  }
  func.func @transform_0(%arg0: i32, %arg1: i32) -> (i32, i32) {
    %c0_i32 = arith.constant 0 : i32
    return %arg0, %arg1 : i32, i32
  }
  func.func @transform_1(%arg0: i32, %arg1: i32) -> (i32, i32) {
    %c0_i32 = arith.constant 0 : i32
    %c0_i32_0 = arith.constant 0 : i32
    %c0_i32_1 = arith.constant 0 : i32
    return %c0_i32, %c0_i32_0 : i32, i32
  }
  func.func @transform_2(%arg0: i32, %arg1: i32) -> (i32, i32) {
    %c0_i32 = arith.constant 0 : i32
    %c0_i32_0 = arith.constant 0 : i32
    return %arg0, %c0_i32 : i32, i32
  }
  func.func @transform_3(%arg0: i32, %arg1: i32) -> (i32, i32) {
    %c0_i32 = arith.constant 0 : i32
    %c0_i32_0 = arith.constant 0 : i32
    return %arg0, %c0_i32 : i32, i32
  }
}

</mosaic_0001>

<llo_original>
// kernel: tpu_custom_call.1
$region0: #{tpu_custom_call.1}
  #allocation0 [shape = 'u32[]', space=smem, size = 0x4, offset = 0x4, fixed_abs, tag = 'smem constant byte address 0x4 - core index']
  #allocation1 [shape = 'u32[144,128]{1,0:T(1,128)}', space=vmem, size = 0x12000, scoped, tag = 'internal scratch']
  %s0 = inlined_call_operand.hbm [shape: f32[256,256], index: 0, kind: input, shape index: {}]
  %s1 = inlined_call_operand.vmem [shape: f32[256,128], index: 1, kind: input, shape index: {}]
  %s2 = inlined_call_operand.vmem [shape: f32[256,1], index: 2, kind: input, shape index: {}]
  %s3 = inlined_call_operand.hbm [shape: f32[256,128], index: 3, kind: output, shape index: {}]
  %s4 = sld [smem:[#allocation0]]
  $region57: #{tpu_custom_call.1} parent=0
    _
  %s6 = ssub.s32 1, %s4
  %s7 = scalar_select 0, %s6, %s4
  $region1: #{tpu_custom_call.1} parent=0
    #allocation2 [shape = 'u8[262144]{0}', space=vmem, size = 0x40000, scoped, tag = 'input window, operand 0']
    #allocation3 [shape = 's32[2]{0}', space=sflag, size = 0x8, scoped, tag = 'scoped memory for tpu_custom_call.1']
    #allocation4 [shape = 's32[2]{0}', space=sflag, size = 0x8, scoped, tag = 'scoped memory for tpu_custom_call.1']
    #allocation5 [shape = 'u8[131072]{0}', space=vmem, size = 0x20000, scoped, tag = 'output window, operand 0']
    %8 = vsyncpa [#allocation3], 0
    %s9 = scalar_lea.sflag [#allocation3], 1
    %10 = vsyncpa %s9, 0
    %11 = vsyncpa [#allocation4], 0
    %s12 = scalar_lea.sflag [#allocation4], 1
    %13 = vsyncpa %s12, 0
    loop: start=0, step=1, limit=4
    $region2: #{tpu_custom_call.1} parent=1 // loop_pre_header
      _
    $region3: #{tpu_custom_call.1} parent=1 // loop_header
      %s15 = sphi 0, %s19
      %p16 = scmp.ge.s32.totalorder %s15, 4
      %s22 = sphi 0, %s34
      %s23 = sphi 0, %s30
      %s24 = sphi 0, %s22
      %s25 = sphi 0, %s23
      %s26 = sphi 0, %s24
      %s27 = sphi 0, %s25
      %s39 = sphi 0, %s41
      %s42 = sphi 0, %s39
      %s43 = sphi 0, %s42
      %s59 = sphi 0, %s43
      %s63 = sphi 0, %s63
      %s65 = sphi 0, %s63
      %s66 = sphi 0, %s65
      %s80 = sphi 0, %s66
      %s86 = sphi 0, %s88
      %s89 = sphi 0, %s86
      %s90 = sphi 0, %s89
      %s106 = sphi 0, %s90
      %s112 = sphi 0, %s114
      %s115 = sphi 0, %s112
      %s116 = sphi 0, %s115
      %s132 = sphi 0, %s116
    $region4: #{tpu_custom_call.1} parent=1 // loop_header_branch
      %18 = sbr.rel (%p16) target = $region8
    $region5: #{tpu_custom_call.1} parent=1 // loop_body
      %s20 = ssub.s32 %s15, 1
      %s21 = ssub.s32 %s15, 2
      %s28 = sadd.s32 1, %s23
      %p29 = scmp.ge.s32.totalorder %s28, 1
      %s30 = scalar_select %p29, 0, %s28
      %s31 = sadd.s32 1, %s22
      %s32 = scalar_select %p29, %s31, %s22
      %p33 = scmp.ge.s32.totalorder %s32, 2
      %s34 = scalar_select %p33, 0, %s32
      %s35 = ssub.s32 %s22, %s34
      %s36 = ssub.s32 %s23, %s30
      %s37 = sor.u32 %s35, %s36
      %p38 = scmp.eq.s32.totalorder %s37, 0
      %s40 = sadd.s32 %s39, 1
      %s41 = scalar_select %p38, %s39, %s40
      %p44 = pneg %p38
      %p45 = scmp.eq.s32.totalorder %s15, 1
      %p46 = por %p44, %p45
      %p47 = scmp.ne.s32.totalorder %s39, %s42
      %p48 = scmp.eq.s32.totalorder %s15, 0
      %p49 = por %p47, %p48
      %p50 = scmp.ne.s32.totalorder %s39, %s42
      %p51 = scmp.eq.s32.totalorder %s20, 1
      %p52 = por %p50, %p51
      %p53 = scmp.ne.s32.totalorder %s42, %s43
      %p54 = scmp.eq.s32.totalorder %s20, 0
      %p55 = por %p53, %p54
      %p56 = scmp.ne.s32.totalorder %s42, %s43
      %p57 = scmp.eq.s32.totalorder %s21, 1
      %p58 = por %p56, %p57
      %p60 = scmp.ne.s32.totalorder %s43, %s59
      %p61 = scmp.eq.s32.totalorder %s21, 0
      %p62 = por %p60, %p61
      %s64 = sadd.s32 %s63, 1
      %p67 = scmp.eq.s32.totalorder %s15, 1
      %p68 = scmp.ne.s32.totalorder %s63, %s65
      %p69 = scmp.eq.s32.totalorder %s15, 0
      %p70 = por %p68, %p69
      %p71 = scmp.ne.s32.totalorder %s63, %s65
      %p72 = scmp.eq.s32.totalorder %s20, 1
      %p73 = por %p71, %p72
      %p74 = scmp.ne.s32.totalorder %s65, %s66
      %p75 = scmp.eq.s32.totalorder %s20, 0
      %p76 = por %p74, %p75
      %p77 = scmp.ne.s32.totalorder %s65, %s66
      %p78 = scmp.eq.s32.totalorder %s21, 1
      %p79 = por %p77, %p78
      %p81 = scmp.ne.s32.totalorder %s66, %s80
      %p82 = scmp.eq.s32.totalorder %s21, 0
      %p83 = por %p81, %p82
      %s84 = ssub.s32 %s22, %s34
      %p85 = scmp.eq.s32.totalorder %s84, 0
      %s87 = sadd.s32 %s86, 1
      %s88 = scalar_select %p85, %s86, %s87
      %p91 = pneg %p85
      %p92 = scmp.eq.s32.totalorder %s15, 1
      %p93 = por %p91, %p92
      %p94 = scmp.ne.s32.totalorder %s86, %s89
      %p95 = scmp.eq.s32.totalorder %s15, 0
      %p96 = por %p94, %p95
      %p97 = scmp.ne.s32.totalorder %s86, %s89
      %p98 = scmp.eq.s32.totalorder %s20, 1
      %p99 = por %p97, %p98
      %p100 = scmp.ne.s32.totalorder %s89, %s90
      %p101 = scmp.eq.s32.totalorder %s20, 0
      %p102 = por %p100, %p101
      %p103 = scmp.ne.s32.totalorder %s89, %s90
      %p104 = scmp.eq.s32.totalorder %s21, 1
      %p105 = por %p103, %p104
      %p107 = scmp.ne.s32.totalorder %s90, %s106
      %p108 = scmp.eq.s32.totalorder %s21, 0
      %p109 = por %p107, %p108
      %s110 = ssub.s32 %s22, %s34
      %p111 = scmp.eq.s32.totalorder %s110, 0
      %s113 = sadd.s32 %s112, 1
      %s114 = scalar_select %p111, %s112, %s113
      %p117 = pneg %p111
      %p118 = scmp.eq.s32.totalorder %s15, 1
      %p119 = por %p117, %p118
      %p120 = scmp.ne.s32.totalorder %s112, %s115
      %p121 = scmp.eq.s32.totalorder %s15, 0
      %p122 = por %p120, %p121
      %p123 = scmp.ne.s32.totalorder %s112, %s115
      %p124 = scmp.eq.s32.totalorder %s20, 1
      %p125 = por %p123, %p124
      %p126 = scmp.ne.s32.totalorder %s115, %s116
      %p127 = scmp.eq.s32.totalorder %s20, 0
      %p128 = por %p126, %p127
      %p129 = scmp.ne.s32.totalorder %s115, %s116
      %p130 = scmp.eq.s32.totalorder %s21, 1
      %p131 = por %p129, %p130
      %p133 = scmp.ne.s32.totalorder %s116, %s132
      %p134 = scmp.eq.s32.totalorder %s21, 0
      %p135 = por %p133, %p134
      %p136 = scmp.le.s32.totalorder 1, %s15
      %p137 = scmp.lt.s32.totalorder %s15, 3
      %p138 = pnand %p136, %p137
      %p139 = pneg %p138
      // Predicated region
      $region9: #{tpu_custom_call.1} parent=5 // pred_check
        _
      $region10: #{tpu_custom_call.1} parent=5 // pred_check_branch
        %141 = sbr.rel (%p138) target = $region12
      $region11: #{tpu_custom_call.1} parent=5 // pred_region
        %s142 = ssub.s32 %s15, 1
        // Predicated region
        $region13: #{tpu_custom_call.1} parent=11 // pred_check
          %p143 = pneg %p76
        $region14: #{tpu_custom_call.1} parent=11 // pred_check_branch
          %145 = sbr.rel (%p143) target = $region16
        $region15: #{tpu_custom_call.1} parent=11 // pred_region
          _
        $region16: #{tpu_custom_call.1} parent=11 // pred_fallthru
          _
      $region12: #{tpu_custom_call.1} parent=5 // pred_fallthru
        _
      %p146 = scmp.lt.s32.totalorder %s15, 2
      // Predicated region
      $region17: #{tpu_custom_call.1} parent=5 // pred_check
        %p147 = pneg %p146
      $region18: #{tpu_custom_call.1} parent=5 // pred_check_branch
        %149 = sbr.rel (%p147) target = $region20
      $region19: #{tpu_custom_call.1} parent=5 // pred_region
        // Predicated region
        $region21: #{tpu_custom_call.1} parent=19 // pred_check
          %p150 = pneg %p49
        $region22: #{tpu_custom_call.1} parent=19 // pred_check_branch
          %152 = sbr.rel (%p150) target = $region24
        $region23: #{tpu_custom_call.1} parent=19 // pred_region
          %s153 = sand.u32 %s39, 1
          %s154 = scalar_lea.sflag [#allocation3], %s153
          %s155 = sand.u32 %s39, 1
          %s156 = smul.addr %s155, 256
          %s157 = scalar_lea.vmem [#allocation2], %s156
          %s158 = smul.u32 16, %s22
          %s159 = smul.u32 2, %s23
          %s161 = ssub.s32 4096, 4096
          %162 = vsyncadd %s154, %s161
          %s163 = smul.addr %s158, 2
          %s164 = sadd.s32 %s159, %s163
          %s165 = smul.addr %s164, 128
          %s166 = scalar_lea.hbm %s0, %s165
          %s167 = sshll.u32 %s157, 4
          %s168 = int_to_ptr.vmem [resolvable:$true] %s167
          %173 = dma.hbm_to_vmem [thread:$0]  %s166, 4096, %s168, %s154, 256, 256, 16
        $region24: #{tpu_custom_call.1} parent=19 // pred_fallthru
          _
        // Predicated region
        $region25: #{tpu_custom_call.1} parent=19 // pred_check
          %p174 = pneg %p96
        $region26: #{tpu_custom_call.1} parent=19 // pred_check_branch
          %176 = sbr.rel (%p174) target = $region28
        $region27: #{tpu_custom_call.1} parent=19 // pred_region
          %s177 = smul.u32 16, %s22
          %p178 = scmp.lt.s32.totalorder %s177, 31
          %s179 = scalar_select %p178, %s177, 31
          %s180 = smul.addr %s179, 8
          %s181 = scalar_lea.vmem %s2, %s180
          %s182 = smul.u32 16, %s22
        $region28: #{tpu_custom_call.1} parent=19 // pred_fallthru
          _
      $region20: #{tpu_custom_call.1} parent=5 // pred_fallthru
        _
      %p183 = scmp.le.s32.totalorder 1, %s15
      %p184 = scmp.lt.s32.totalorder %s15, 3
      %p185 = pnand %p183, %p184
      %p186 = pneg %p185
      // Predicated region
      $region29: #{tpu_custom_call.1} parent=5 // pred_check
        _
      $region30: #{tpu_custom_call.1} parent=5 // pred_check_branch
        %188 = sbr.rel (%p185) target = $region32
      $region31: #{tpu_custom_call.1} parent=5 // pred_region
        %s189 = ssub.s32 %s15, 1
        %s190 = sand.u32 %s42, 1
        %s191 = scalar_lea.sflag [#allocation3], %s190
        %s192 = sand.u32 %s42, 1
        %s193 = smul.addr %s192, 256
        %s194 = scalar_lea.vmem [#allocation2], %s193
        // Predicated region
        $region33: #{tpu_custom_call.1} parent=31 // pred_check
          %p195 = pneg %p55
        $region34: #{tpu_custom_call.1} parent=31 // pred_check_branch
          %197 = sbr.rel (%p195) target = $region36
        $region35: #{tpu_custom_call.1} parent=31 // pred_region
          %198 = dma.done %s191, 4096
        $region36: #{tpu_custom_call.1} parent=31 // pred_fallthru
          _
        %s199 = sand.u32 %s42, 1
        %s200 = scalar_lea.sflag [#allocation3], %s199
        %s201 = sand.u32 %s42, 1
        %s202 = smul.addr %s201, 256
        %s203 = scalar_lea.vmem [#allocation2], %s202
        %p204 = pneg %p55
        %p205 = pneg %p52
        %p206 = pneg %p76
        %p207 = pneg %p73
        %s208 = smul.u32 16, %s24
        %p209 = scmp.lt.s32.totalorder %s208, 31
        %s210 = scalar_select %p209, %s208, 31
        %s211 = smul.addr %s210, 8
        %s212 = scalar_lea.vmem %s2, %s211
        %p213 = pneg %p102
        %p214 = pneg %p99
        %p215 = pneg %p128
        %p216 = pneg %p125
        %s217 = sand.u32 %s115, 1
        %s218 = scalar_lea.sflag [#allocation4], %s217
        %s219 = sand.u32 %s115, 1
        %s220 = smul.addr %s219, 128
        %s221 = scalar_lea.vmem [#allocation5], %s220
        %s222 = smul.u32 16, %s24
        %s223 = smul.u32 2, %s25
        %s224 = smul.u32 16, %s24
        %p225 = scmp.lt.s32.totalorder %s224, 31
        %s226 = scalar_select %p225, %s224, 31
        %s227 = smul.addr %s226, 8
        %s228 = scalar_lea.vmem %s2, %s227
        %s229 = smul.u32 16, %s24
        %s230 = smul.u32 16, %s24
        %p231 = scmp.eq.s32.totalorder %s25, 0
        // Predicated region
        $region37: #{tpu_custom_call.1} parent=31 // pred_check
          %p232 = pneg %p231
        $region38: #{tpu_custom_call.1} parent=31 // pred_check_branch
          %234 = sbr.rel (%p232) target = $region40
        $region39: #{tpu_custom_call.1} parent=31 // pred_region
          %s235 = smul.u32 %s24, 128
          %s236 = scalar_lea.vmem %s1, %s235
          %v237 = vld [vmem:[%s236] sm:$0xff]
          %v238 = vld [vmem:[%s236 + $0x8] sm:$0xff]
          %v239 = vld [vmem:[%s236 + $0x10] sm:$0xff]
          %v240 = vld [vmem:[%s236 + $0x18] sm:$0xff]
          %v241 = vld [vmem:[%s236 + $0x20] sm:$0xff]
          %v242 = vld [vmem:[%s236 + $0x28] sm:$0xff]
          %v243 = vld [vmem:[%s236 + $0x30] sm:$0xff]
          %v244 = vld [vmem:[%s236 + $0x38] sm:$0xff]
          %v245 = vld [vmem:[%s236 + $0x40] sm:$0xff]
          %v246 = vld [vmem:[%s236 + $0x48] sm:$0xff]
          %v247 = vld [vmem:[%s236 + $0x50] sm:$0xff]
          %v248 = vld [vmem:[%s236 + $0x58] sm:$0xff]
          %v249 = vld [vmem:[%s236 + $0x60] sm:$0xff]
          %v250 = vld [vmem:[%s236 + $0x68] sm:$0xff]
          %v251 = vld [vmem:[%s236 + $0x70] sm:$0xff]
          %v252 = vld [vmem:[%s236 + $0x78] sm:$0xff]
          %253 = vst [vmem:[%s221] sm:$0xff] %v237
          %254 = vst [vmem:[%s221 + $0x8] sm:$0xff] %v238
          %255 = vst [vmem:[%s221 + $0x10] sm:$0xff] %v239
          %256 = vst [vmem:[%s221 + $0x18] sm:$0xff] %v240
          %257 = vst [vmem:[%s221 + $0x20] sm:$0xff] %v241
          %258 = vst [vmem:[%s221 + $0x28] sm:$0xff] %v242
          %259 = vst [vmem:[%s221 + $0x30] sm:$0xff] %v243
          %260 = vst [vmem:[%s221 + $0x38] sm:$0xff] %v244
          %261 = vst [vmem:[%s221 + $0x40] sm:$0xff] %v245
          %262 = vst [vmem:[%s221 + $0x48] sm:$0xff] %v246
          %263 = vst [vmem:[%s221 + $0x50] sm:$0xff] %v247
          %264 = vst [vmem:[%s221 + $0x58] sm:$0xff] %v248
          %265 = vst [vmem:[%s221 + $0x60] sm:$0xff] %v249
          %266 = vst [vmem:[%s221 + $0x68] sm:$0xff] %v250
          %267 = vst [vmem:[%s221 + $0x70] sm:$0xff] %v251
          %268 = vst [vmem:[%s221 + $0x78] sm:$0xff] %v252
        $region40: #{tpu_custom_call.1} parent=31 // pred_fallthru
          _
        %s269 = smul.u32 %s25, 256
        %v270 = vld [vmem:[%s221] sm:$0xff]
        %v271 = vld [vmem:[%s221 + $0x8] sm:$0xff]
        %v272 = vld [vmem:[%s221 + $0x10] sm:$0xff]
        %v273 = vld [vmem:[%s221 + $0x18] sm:$0xff]
        %v274 = vld [vmem:[%s221 + $0x20] sm:$0xff]
        %v275 = vld [vmem:[%s221 + $0x28] sm:$0xff]
        %v276 = vld [vmem:[%s221 + $0x30] sm:$0xff]
        %v277 = vld [vmem:[%s221 + $0x38] sm:$0xff]
        %v278 = vld [vmem:[%s221 + $0x40] sm:$0xff]
        %v279 = vld [vmem:[%s221 + $0x48] sm:$0xff]
        %v280 = vld [vmem:[%s221 + $0x50] sm:$0xff]
        %v281 = vld [vmem:[%s221 + $0x58] sm:$0xff]
        %v282 = vld [vmem:[%s221 + $0x60] sm:$0xff]
        %v283 = vld [vmem:[%s221 + $0x68] sm:$0xff]
        %v284 = vld [vmem:[%s221 + $0x70] sm:$0xff]
        %v285 = vld [vmem:[%s221 + $0x78] sm:$0xff]
        %v286 = vld [vmem:[%s194] sm:$0xff]
        %v287 = vld [vmem:[%s194 + $0x8] sm:$0xff]
        %v288 = vld [vmem:[%s194 + $0x10] sm:$0xff]
        %v289 = vld [vmem:[%s194 + $0x18] sm:$0xff]
        %v290 = vld [vmem:[%s194 + $0x20] sm:$0xff]
        %v291 = vld [vmem:[%s194 + $0x28] sm:$0xff]
        %v292 = vld [vmem:[%s194 + $0x30] sm:$0xff]
        %v293 = vld [vmem:[%s194 + $0x38] sm:$0xff]
        %v294 = vld [vmem:[%s194 + $0x40] sm:$0xff]
        %v295 = vld [vmem:[%s194 + $0x48] sm:$0xff]
        %v296 = vld [vmem:[%s194 + $0x50] sm:$0xff]
        %v297 = vld [vmem:[%s194 + $0x58] sm:$0xff]
        %v298 = vld [vmem:[%s194 + $0x60] sm:$0xff]
        %v299 = vld [vmem:[%s194 + $0x68] sm:$0xff]
        %v300 = vld [vmem:[%s194 + $0x70] sm:$0xff]
        %v301 = vld [vmem:[%s194 + $0x78] sm:$0xff]
        %v302 = vld [vmem:[%s194 + $0x80] sm:$0xff]
        %v303 = vld [vmem:[%s194 + $0x88] sm:$0xff]
        %v304 = vld [vmem:[%s194 + $0x90] sm:$0xff]
        %v305 = vld [vmem:[%s194 + $0x98] sm:$0xff]
        %v306 = vld [vmem:[%s194 + $0xa0] sm:$0xff]
        %v307 = vld [vmem:[%s194 + $0xa8] sm:$0xff]
        %v308 = vld [vmem:[%s194 + $0xb0] sm:$0xff]
        %v309 = vld [vmem:[%s194 + $0xb8] sm:$0xff]
        %v310 = vld [vmem:[%s194 + $0xc0] sm:$0xff]
        %v311 = vld [vmem:[%s194 + $0xc8] sm:$0xff]
        %v312 = vld [vmem:[%s194 + $0xd0] sm:$0xff]
        %v313 = vld [vmem:[%s194 + $0xd8] sm:$0xff]
        %v314 = vld [vmem:[%s194 + $0xe0] sm:$0xff]
        %v315 = vld [vmem:[%s194 + $0xe8] sm:$0xff]
        %v316 = vld [vmem:[%s194 + $0xf0] sm:$0xff]
        %v317 = vld [vmem:[%s194 + $0xf8] sm:$0xff]
        %s318 = scalar_lea.vmem %s1, %s269
        %v319 = vld [vmem:[%s318] sm:$0xff]
        %v320 = vld [vmem:[%s318 + $0x8] sm:$0xff]
        %v321 = vld [vmem:[%s318 + $0x10] sm:$0xff]
        %v322 = vld [vmem:[%s318 + $0x18] sm:$0xff]
        %v323 = vld [vmem:[%s318 + $0x20] sm:$0xff]
        %v324 = vld [vmem:[%s318 + $0x28] sm:$0xff]
        %v325 = vld [vmem:[%s318 + $0x30] sm:$0xff]
        %v326 = vld [vmem:[%s318 + $0x38] sm:$0xff]
        %v327 = vld [vmem:[%s318 + $0x40] sm:$0xff]
        %v328 = vld [vmem:[%s318 + $0x48] sm:$0xff]
        %v329 = vld [vmem:[%s318 + $0x50] sm:$0xff]
        %v330 = vld [vmem:[%s318 + $0x58] sm:$0xff]
        %v331 = vld [vmem:[%s318 + $0x60] sm:$0xff]
        %v332 = vld [vmem:[%s318 + $0x68] sm:$0xff]
        %v333 = vld [vmem:[%s318 + $0x70] sm:$0xff]
        %v334 = vld [vmem:[%s318 + $0x78] sm:$0xff]
        %v335 = vld [vmem:[%s318 + $0x80] sm:$0xff]
        %v336 = vld [vmem:[%s318 + $0x88] sm:$0xff]
        %v337 = vld [vmem:[%s318 + $0x90] sm:$0xff]
        %v338 = vld [vmem:[%s318 + $0x98] sm:$0xff]
        %v339 = vld [vmem:[%s318 + $0xa0] sm:$0xff]
        %v340 = vld [vmem:[%s318 + $0xa8] sm:$0xff]
        %v341 = vld [vmem:[%s318 + $0xb0] sm:$0xff]
        %v342 = vld [vmem:[%s318 + $0xb8] sm:$0xff]
        %v343 = vld [vmem:[%s318 + $0xc0] sm:$0xff]
        %v344 = vld [vmem:[%s318 + $0xc8] sm:$0xff]
        %v345 = vld [vmem:[%s318 + $0xd0] sm:$0xff]
        %v346 = vld [vmem:[%s318 + $0xd8] sm:$0xff]
        %v347 = vld [vmem:[%s318 + $0xe0] sm:$0xff]
        %v348 = vld [vmem:[%s318 + $0xe8] sm:$0xff]
        %v349 = vld [vmem:[%s318 + $0xf0] sm:$0xff]
        %v350 = vld [vmem:[%s318 + $0xf8] sm:$0xff]
        %351 = vmatprep.subr.mxu0 0.0
        %352 = vmatpush1.msra.mxu0 %v319
        %353 = vmatprep.subr.mxu0 0.0
        %354 = vmatpush1.msra.mxu0 %v320
        %355 = vmatprep.subr.mxu0 0.0
        %356 = vmatpush1.msra.mxu0 %v321
        %357 = vmatprep.subr.mxu0 0.0
        %358 = vmatpush1.msra.mxu0 %v322
        %359 = vmatprep.subr.mxu0 0.0
        %360 = vmatpush1.msra.mxu0 %v323
        %361 = vmatprep.subr.mxu0 0.0
        %362 = vmatpush1.msra.mxu0 %v324
        %363 = vmatprep.subr.mxu0 0.0
        %364 = vmatpush1.msra.mxu0 %v325
        %365 = vmatprep.subr.mxu0 0.0
        %366 = vmatpush1.msra.mxu0 %v326
        %367 = vmatprep.subr.mxu0 0.0
        %368 = vmatpush1.msra.mxu0 %v327
        %369 = vmatprep.subr.mxu0 0.0
        %370 = vmatpush1.msra.mxu0 %v328
        %371 = vmatprep.subr.mxu0 0.0
        %372 = vmatpush1.msra.mxu0 %v329
        %373 = vmatprep.subr.mxu0 0.0
        %374 = vmatpush1.msra.mxu0 %v330
        %375 = vmatprep.subr.mxu0 0.0
        %376 = vmatpush1.msra.mxu0 %v331
        %377 = vmatprep.subr.mxu0 0.0
        %378 = vmatpush1.msra.mxu0 %v332
        %379 = vmatprep.subr.mxu0 0.0
        %380 = vmatpush1.msra.mxu0 %v333
        %381 = vmatprep.subr.mxu0 0.0
        %382 = vmatpush1.msra.mxu0 %v334
        %383 = vmatprep.subr.mxu0 0.0
        %384 = vmatpush1.msra.mxu0 %v335
        %385 = vmatprep.subr.mxu0 0.0
        %386 = vmatpush1.msra.mxu0 %v336
        %387 = vmatprep.subr.mxu0 0.0
        %388 = vmatpush1.msra.mxu0 %v337
        %389 = vmatprep.subr.mxu0 0.0
        %390 = vmatpush1.msra.mxu0 %v338
        %391 = vmatprep.subr.mxu0 0.0
        %392 = vmatpush1.msra.mxu0 %v339
        %393 = vmatprep.subr.mxu0 0.0
        %394 = vmatpush1.msra.mxu0 %v340
        %395 = vmatprep.subr.mxu0 0.0
        %396 = vmatpush1.msra.mxu0 %v341
        %397 = vmatprep.subr.mxu0 0.0
        %398 = vmatpush1.msra.mxu0 %v342
        %399 = vmatprep.subr.mxu0 0.0
        %400 = vmatpush1.msra.mxu0 %v343
        %401 = vmatprep.subr.mxu0 0.0
        %402 = vmatpush1.msra.mxu0 %v344
        %403 = vmatprep.subr.mxu0 0.0
        %404 = vmatpush1.msra.mxu0 %v345
        %405 = vmatprep.subr.mxu0 0.0
        %406 = vmatpush1.msra.mxu0 %v346
        %407 = vmatprep.subr.mxu0 0.0
        %408 = vmatpush1.msra.mxu0 %v347
        %409 = vmatprep.subr.mxu0 0.0
        %410 = vmatpush1.msra.mxu0 %v348
        %411 = vmatprep.subr.mxu0 0.0
        %412 = vmatpush1.msra.mxu0 %v349
        %413 = vmatprep.subr.mxu0 0.0
        %414 = vmatpush1.msra.mxu0 %v350
        %415 = vmatprep.mubr.f32.mxu0 %v287
        %416 = vmatmul.mubr.f32.gmra.mrb[0].mxu0 %v286
        %v417 = vpop.f32.mrb[0].mxu0
        %v418 = vadd.f32 0.0, %v417
        %v419 = vpop.f32.mrb[0].mxu0
        %420 = vmatprep.mubr.f32.mxu0 %v289
        %421 = vmatmul.mubr.f32.gmra.mrb[0].mxu0 %v288
        %v422 = vpop.f32.mrb[0].mxu0
        %v423 = vadd.f32 0.0, %v422
        %v424 = vpop.f32.mrb[0].mxu0
        %425 = vmatprep.mubr.f32.mxu0 %v291
        %426 = vmatmul.mubr.f32.gmra.mrb[0].mxu0 %v290
        %v427 = vpop.f32.mrb[0].mxu0
        %v428 = vadd.f32 0.0, %v427
        %v429 = vpop.f32.mrb[0].mxu0
        %430 = vmatprep.mubr.f32.mxu0 %v293
        %431 = vmatmul.mubr.f32.gmra.mrb[0].mxu0 %v292
        %v432 = vpop.f32.mrb[0].mxu0
        %v433 = vadd.f32 0.0, %v432
        %v434 = vpop.f32.mrb[0].mxu0
        %435 = vmatprep.mubr.f32.mxu0 %v295
        %436 = vmatmul.mubr.f32.gmra.mrb[0].mxu0 %v294
        %v437 = vpop.f32.mrb[0].mxu0
        %v438 = vadd.f32 0.0, %v437
        %v439 = vpop.f32.mrb[0].mxu0
        %440 = vmatprep.mubr.f32.mxu0 %v297
        %441 = vmatmul.mubr.f32.gmra.mrb[0].mxu0 %v296
        %v442 = vpop.f32.mrb[0].mxu0
        %v443 = vadd.f32 0.0, %v442
        %v444 = vpop.f32.mrb[0].mxu0
        %445 = vmatprep.mubr.f32.mxu0 %v299
        %446 = vmatmul.mubr.f32.gmra.mrb[0].mxu0 %v298
        %v447 = vpop.f32.mrb[0].mxu0
        %v448 = vadd.f32 0.0, %v447
        %v449 = vpop.f32.mrb[0].mxu0
        %450 = vmatprep.mubr.f32.mxu0 %v301
        %451 = vmatmul.mubr.f32.gmra.mrb[0].mxu0 %v300
        %v452 = vpop.f32.mrb[0].mxu0
        %v453 = vadd.f32 0.0, %v452
        %v454 = vpop.f32.mrb[0].mxu0
        %455 = vmatprep.mubr.f32.mxu0 %v303
        %456 = vmatmul.mubr.f32.gmra.mrb[0].mxu0 %v302
        %v457 = vpop.f32.mrb[0].mxu0
        %v458 = vadd.f32 0.0, %v457
        %v459 = vpop.f32.mrb[0].mxu0
        %460 = vmatprep.mubr.f32.mxu0 %v305
        %461 = vmatmul.mubr.f32.gmra.mrb[0].mxu0 %v304
        %v462 = vpop.f32.mrb[0].mxu0
        %v463 = vadd.f32 0.0, %v462
        %v464 = vpop.f32.mrb[0].mxu0
        %465 = vmatprep.mubr.f32.mxu0 %v307
        %466 = vmatmul.mubr.f32.gmra.mrb[0].mxu0 %v306
        %v467 = vpop.f32.mrb[0].mxu0
        %v468 = vadd.f32 0.0, %v467
        %v469 = vpop.f32.mrb[0].mxu0
        %470 = vmatprep.mubr.f32.mxu0 %v309
        %471 = vmatmul.mubr.f32.gmra.mrb[0].mxu0 %v308
        %v472 = vpop.f32.mrb[0].mxu0
        %v473 = vadd.f32 0.0, %v472
        %v474 = vpop.f32.mrb[0].mxu0
        %475 = vmatprep.mubr.f32.mxu0 %v311
        %476 = vmatmul.mubr.f32.gmra.mrb[0].mxu0 %v310
        %v477 = vpop.f32.mrb[0].mxu0
        %v478 = vadd.f32 0.0, %v477
        %v479 = vpop.f32.mrb[0].mxu0
        %480 = vmatprep.mubr.f32.mxu0 %v313
        %481 = vmatmul.mubr.f32.gmra.mrb[0].mxu0 %v312
        %v482 = vpop.f32.mrb[0].mxu0
        %v483 = vadd.f32 0.0, %v482
        %v484 = vpop.f32.mrb[0].mxu0
        %485 = vmatprep.mubr.f32.mxu0 %v315
        %486 = vmatmul.mubr.f32.gmra.mrb[0].mxu0 %v314
        %v487 = vpop.f32.mrb[0].mxu0
        %v488 = vadd.f32 0.0, %v487
        %v489 = vpop.f32.mrb[0].mxu0
        %490 = vmatprep.mubr.f32.mxu0 %v317
        %491 = vmatmul.mubr.f32.gmra.mrb[0].mxu0 %v316
        %v492 = vpop.f32.mrb[0].mxu0
        %v493 = vadd.f32 0.0, %v492
        %v494 = vpop.f32.mrb[0].mxu0
        %495 = vdwg.mxu0
        %v496 = vadd.f32 %v270, %v418
        %v497 = vadd.f32 %v271, %v423
        %v498 = vadd.f32 %v272, %v428
        %v499 = vadd.f32 %v273, %v433
        %v500 = vadd.f32 %v274, %v438
        %v501 = vadd.f32 %v275, %v443
        %v502 = vadd.f32 %v276, %v448
        %v503 = vadd.f32 %v277, %v453
        %v504 = vadd.f32 %v278, %v458
        %v505 = vadd.f32 %v279, %v463
        %v506 = vadd.f32 %v280, %v468
        %v507 = vadd.f32 %v281, %v473
        %v508 = vadd.f32 %v282, %v478
        %v509 = vadd.f32 %v283, %v483
        %v510 = vadd.f32 %v284, %v488
        %v511 = vadd.f32 %v285, %v493
        %512 = vst [vmem:[%s221] sm:$0xff] %v496
        %513 = vst [vmem:[%s221 + $0x8] sm:$0xff] %v497
        %514 = vst [vmem:[%s221 + $0x10] sm:$0xff] %v498
        %515 = vst [vmem:[%s221 + $0x18] sm:$0xff] %v499
        %516 = vst [vmem:[%s221 + $0x20] sm:$0xff] %v500
        %517 = vst [vmem:[%s221 + $0x28] sm:$0xff] %v501
        %518 = vst [vmem:[%s221 + $0x30] sm:$0xff] %v502
        %519 = vst [vmem:[%s221 + $0x38] sm:$0xff] %v503
        %520 = vst [vmem:[%s221 + $0x40] sm:$0xff] %v504
        %521 = vst [vmem:[%s221 + $0x48] sm:$0xff] %v505
        %522 = vst [vmem:[%s221 + $0x50] sm:$0xff] %v506
        %523 = vst [vmem:[%s221 + $0x58] sm:$0xff] %v507
        %524 = vst [vmem:[%s221 + $0x60] sm:$0xff] %v508
        %525 = vst [vmem:[%s221 + $0x68] sm:$0xff] %v509
        %526 = vst [vmem:[%s221 + $0x70] sm:$0xff] %v510
        %527 = vst [vmem:[%s221 + $0x78] sm:$0xff] %v511
        // Predicated region
        $region41: #{tpu_custom_call.1} parent=31 // pred_check
          %p528 = pneg %p231
        $region42: #{tpu_custom_call.1} parent=31 // pred_check_branch
          %530 = sbr.rel (%p528) target = $region44
        $region43: #{tpu_custom_call.1} parent=31 // pred_region
          %v531 = vld [vmem:[%s221] sm:$0xff]
          %v532 = vld [vmem:[%s221 + $0x8] sm:$0xff]
          %v533 = vld [vmem:[%s221 + $0x10] sm:$0xff]
          %v534 = vld [vmem:[%s221 + $0x18] sm:$0xff]
          %v535 = vld [vmem:[%s221 + $0x20] sm:$0xff]
          %v536 = vld [vmem:[%s221 + $0x28] sm:$0xff]
          %v537 = vld [vmem:[%s221 + $0x30] sm:$0xff]
          %v538 = vld [vmem:[%s221 + $0x38] sm:$0xff]
          %v539 = vld [vmem:[%s221 + $0x40] sm:$0xff]
          %v540 = vld [vmem:[%s221 + $0x48] sm:$0xff]
          %v541 = vld [vmem:[%s221 + $0x50] sm:$0xff]
          %v542 = vld [vmem:[%s221 + $0x58] sm:$0xff]
          %v543 = vld [vmem:[%s221 + $0x60] sm:$0xff]
          %v544 = vld [vmem:[%s221 + $0x68] sm:$0xff]
          %v545 = vld [vmem:[%s221 + $0x70] sm:$0xff]
          %v546 = vld [vmem:[%s221 + $0x78] sm:$0xff]
          %v547 = vld [vmem:[%s228] sm:$0xff]
          %v548 = vld [vmem:[%s228 + $0x8] sm:$0xff]
          %v549 = vld [vmem:[%s228 + $0x10] sm:$0xff]
          %v550 = vld [vmem:[%s228 + $0x18] sm:$0xff]
          %v551 = vld [vmem:[%s228 + $0x20] sm:$0xff]
          %v552 = vld [vmem:[%s228 + $0x28] sm:$0xff]
          %v553 = vld [vmem:[%s228 + $0x30] sm:$0xff]
          %v554 = vld [vmem:[%s228 + $0x38] sm:$0xff]
          %v555 = vld [vmem:[%s228 + $0x40] sm:$0xff]
          %v556 = vld [vmem:[%s228 + $0x48] sm:$0xff]
          %v557 = vld [vmem:[%s228 + $0x50] sm:$0xff]
          %v558 = vld [vmem:[%s228 + $0x58] sm:$0xff]
          %v559 = vld [vmem:[%s228 + $0x60] sm:$0xff]
          %v560 = vld [vmem:[%s228 + $0x68] sm:$0xff]
          %v561 = vld [vmem:[%s228 + $0x70] sm:$0xff]
          %v562 = vld [vmem:[%s228 + $0x78] sm:$0xff]
          %564 = vset.pattern.permute.xlu0 0
          %565 = vperm.xlu0 %564, %v547
          %v566 = vpop.permute.xlu0 %565
          %569 = vset.pattern.permute.xlu0 0
          %570 = vperm.xlu0 %569, %v548
          %v571 = vpop.permute.xlu0 %570
          %574 = vset.pattern.permute.xlu0 0
          %575 = vperm.xlu0 %574, %v549
          %v576 = vpop.permute.xlu0 %575
          %579 = vset.pattern.permute.xlu0 0
          %580 = vperm.xlu0 %579, %v550
          %v581 = vpop.permute.xlu0 %580
          %584 = vset.pattern.permute.xlu0 0
          %585 = vperm.xlu0 %584, %v551
          %v586 = vpop.permute.xlu0 %585
          %589 = vset.pattern.permute.xlu0 0
          %590 = vperm.xlu0 %589, %v552
          %v591 = vpop.permute.xlu0 %590
          %594 = vset.pattern.permute.xlu0 0
          %595 = vperm.xlu0 %594, %v553
          %v596 = vpop.permute.xlu0 %595
          %599 = vset.pattern.permute.xlu0 0
          %600 = vperm.xlu0 %599, %v554
          %v601 = vpop.permute.xlu0 %600
          %604 = vset.pattern.permute.xlu0 0
          %605 = vperm.xlu0 %604, %v555
          %v606 = vpop.permute.xlu0 %605
          %609 = vset.pattern.permute.xlu0 0
          %610 = vperm.xlu0 %609, %v556
          %v611 = vpop.permute.xlu0 %610
          %614 = vset.pattern.permute.xlu0 0
          %615 = vperm.xlu0 %614, %v557
          %v616 = vpop.permute.xlu0 %615
          %619 = vset.pattern.permute.xlu0 0
          %620 = vperm.xlu0 %619, %v558
          %v621 = vpop.permute.xlu0 %620
          %624 = vset.pattern.permute.xlu0 0
          %625 = vperm.xlu0 %624, %v559
          %v626 = vpop.permute.xlu0 %625
          %629 = vset.pattern.permute.xlu0 0
          %630 = vperm.xlu0 %629, %v560
          %v631 = vpop.permute.xlu0 %630
          %634 = vset.pattern.permute.xlu0 0
          %635 = vperm.xlu0 %634, %v561
          %v636 = vpop.permute.xlu0 %635
          %639 = vset.pattern.permute.xlu0 0
          %640 = vperm.xlu0 %639, %v562
          %v641 = vpop.permute.xlu0 %640
          %v643 = vmul.f32 %v531, %v566
          %v644 = vmul.f32 %v532, %v571
          %v645 = vmul.f32 %v533, %v576
          %v646 = vmul.f32 %v534, %v581
          %v647 = vmul.f32 %v535, %v586
          %v648 = vmul.f32 %v536, %v591
          %v649 = vmul.f32 %v537, %v596
          %v650 = vmul.f32 %v538, %v601
          %v651 = vmul.f32 %v539, %v606
          %v652 = vmul.f32 %v540, %v611
          %v653 = vmul.f32 %v541, %v616
          %v654 = vmul.f32 %v542, %v621
          %v655 = vmul.f32 %v543, %v626
          %v656 = vmul.f32 %v544, %v631
          %v657 = vmul.f32 %v545, %v636
          %v658 = vmul.f32 %v546, %v641
          %659 = vst [vmem:[%s221] sm:$0xff] %v643
          %660 = vst [vmem:[%s221 + $0x8] sm:$0xff] %v644
          %661 = vst [vmem:[%s221 + $0x10] sm:$0xff] %v645
          %662 = vst [vmem:[%s221 + $0x18] sm:$0xff] %v646
          %663 = vst [vmem:[%s221 + $0x20] sm:$0xff] %v647
          %664 = vst [vmem:[%s221 + $0x28] sm:$0xff] %v648
          %665 = vst [vmem:[%s221 + $0x30] sm:$0xff] %v649
          %666 = vst [vmem:[%s221 + $0x38] sm:$0xff] %v650
          %667 = vst [vmem:[%s221 + $0x40] sm:$0xff] %v651
          %668 = vst [vmem:[%s221 + $0x48] sm:$0xff] %v652
          %669 = vst [vmem:[%s221 + $0x50] sm:$0xff] %v653
          %670 = vst [vmem:[%s221 + $0x58] sm:$0xff] %v654
          %671 = vst [vmem:[%s221 + $0x60] sm:$0xff] %v655
          %672 = vst [vmem:[%s221 + $0x68] sm:$0xff] %v656
          %673 = vst [vmem:[%s221 + $0x70] sm:$0xff] %v657
          %674 = vst [vmem:[%s221 + $0x78] sm:$0xff] %v658
        $region44: #{tpu_custom_call.1} parent=31 // pred_fallthru
          _
        %s675 = sand.u32 %s115, 1
        %s676 = scalar_lea.sflag [#allocation4], %s675
        %s677 = sand.u32 %s115, 1
        %s678 = smul.addr %s677, 128
        %s679 = scalar_lea.vmem [#allocation5], %s678
        // Predicated region
        $region45: #{tpu_custom_call.1} parent=31 // pred_check
          %p680 = pneg %p125
        $region46: #{tpu_custom_call.1} parent=31 // pred_check_branch
          %682 = sbr.rel (%p680) target = $region48
        $region47: #{tpu_custom_call.1} parent=31 // pred_region
          %s683 = smul.u32 16, %s24
          %s685 = ssub.s32 2048, 2048
          %686 = vsyncadd %s676, %s685
          %s687 = smul.addr %s683, 128
          %s688 = scalar_lea.hbm %s3, %s687
          %s689 = sshll.u32 %s679, 4
          %s690 = int_to_ptr.vmem [resolvable:$true] %s689
          %695 = dma.vmem_to_hbm [thread:$0]  %s690, 2048, %s688, %s676, 128, 128, 8
        $region48: #{tpu_custom_call.1} parent=31 // pred_fallthru
          _
      $region32: #{tpu_custom_call.1} parent=5 // pred_fallthru
        _
      %p696 = scmp.le.s32.totalorder 2, %s15
      // Predicated region
      $region49: #{tpu_custom_call.1} parent=5 // pred_check
        %p697 = pneg %p696
      $region50: #{tpu_custom_call.1} parent=5 // pred_check_branch
        %699 = sbr.rel (%p697) target = $region52
      $region51: #{tpu_custom_call.1} parent=5 // pred_region
        %s700 = ssub.s32 %s15, 2
        // Predicated region
        $region53: #{tpu_custom_call.1} parent=51 // pred_check
          %p701 = pneg %p131
        $region54: #{tpu_custom_call.1} parent=51 // pred_check_branch
          %703 = sbr.rel (%p701) target = $region56
        $region55: #{tpu_custom_call.1} parent=51 // pred_region
          %s704 = sand.u32 %s116, 1
          %s705 = scalar_lea.sflag [#allocation4], %s704
          %s706 = sand.u32 %s116, 1
          %s707 = smul.addr %s706, 128
          %s708 = scalar_lea.vmem [#allocation5], %s707
          %709 = dma.done %s705, 2048
        $region56: #{tpu_custom_call.1} parent=51 // pred_fallthru
          _
      $region52: #{tpu_custom_call.1} parent=5 // pred_fallthru
        _
    $region6: #{tpu_custom_call.1} parent=1 // loop_footer
      %s19 = sadd.s32 1, %s15
    $region7: #{tpu_custom_call.1} parent=1 // loop_footer_branch
      %14 = sbr.rel target = $region3
    $region8: #{tpu_custom_call.1} parent=1 // loop_exit
      _
    %710 = vsyncpa [#allocation3], 1
    %s711 = scalar_lea.sflag [#allocation3], 1
    %712 = vsyncpa %s711, 1
    %713 = vsyncpa [#allocation4], 1
    %s714 = scalar_lea.sflag [#allocation4], 1
    %715 = vsyncpa %s714, 1

</llo_original>
